<compile_context>
chip_gen: v7x
topology: tpu7x:2x2x1
jax: 0.10.0
libtpu: 0.0.40
codegen_flags: <defaults>
</compile_context>

<pallas_src>
import jax
import jax.numpy as jnp
from jax.experimental import pallas as pl
from jax.experimental.pallas import tpu as pltpu


def _round_up(x, m):
    return ((x + m - 1) // m) * m


def _make_kernel(first_broadcast, final_reduce, matmul_dtype):
    """Build the fused MLP kernel (transposed layout: activations are (feat, tile_b)).

    Flags are Python/static so each variant is specialized at trace time.
    """

    def kernel(x_ref, w0_ref, beta0_ref, w1_ref, beta1_ref, w2_ref, beta2_ref,
               w3_ref, o_ref):
        x = x_ref[...]  # (in_features, tile_b), lane-dense over the batch

        # ---- Layer 1: LinReLU(in_features -> num_units), bias folded into beta0.
        if first_broadcast:
            # in_features == 1: rank-1 update is a pure VPU broadcast multiply.
            # (num_units, 1) * (1, tile_b) + (num_units, 1) -> (num_units, tile_b)
            h = w0_ref[...] * x + beta0_ref[...]
        else:
            h = jnp.dot(w0_ref[...].astype(matmul_dtype), x.astype(matmul_dtype),
                        preferred_element_type=jnp.float32) + beta0_ref[...]
        h = jnp.maximum(h, 0.0)

        # ---- Layer 2: LinReLU(num_units -> 64), MXU matmul, f32 accumulate.
        h = jnp.maximum(
            jnp.dot(w1_ref[...].astype(matmul_dtype), h.astype(matmul_dtype),
                    preferred_element_type=jnp.float32) + beta1_ref[...],
            0.0)

        # ---- Layer 3: LinReLU(64 -> 32).
        h = jnp.maximum(
            jnp.dot(w2_ref[...].astype(matmul_dtype), h.astype(matmul_dtype),
                    preferred_element_type=jnp.float32) + beta2_ref[...],
            0.0)

        # ---- Final Linear(32 -> output_shape, bias=False).
        if final_reduce:
            # output_shape == 1: VPU multiply + sublane (XLU) reduce; lane-dense result.
            o = jnp.sum(w3_ref[...] * h, axis=0, keepdims=True)       # (1, tile_b)
        else:
            o = jnp.dot(w3_ref[...].astype(matmul_dtype), h.astype(matmul_dtype),
                        preferred_element_type=jnp.float32)           # (out, tile_b)
        o_ref[...] = o.astype(o_ref.dtype)

    return kernel


def feature_nn_forward(x, params, *, tile_b=1024, matmul_dtype=jnp.float32):
    """x: (B,) float32 feature column (or (B, in_features)). Returns (B, output_shape) f32."""
    (w0, b0), (w1, b1), (w2, b2), w3 = params
    in_features = w0.shape[0]
    num_units = w0.shape[1]
    hidden_last = w3.shape[0]
    out_features = w3.shape[1]

    B = x.shape[0]

    # ---- Batch tiling: large lane-dense tiles (multiple of 128); adapt down for
    # small batches so padding stays bounded. Pad B up to a multiple of tile_b.
    tile_b = _round_up(max(128, min(int(tile_b), _round_up(B, 128))), 128)
    Bp = _round_up(B, tile_b)

    # torch: inputs.unsqueeze(1) -> (B, in_features); here we keep the TRANSPOSE
    # (in_features, B) so the batch lives on the lane axis everywhere.
    xT = x.reshape(B, in_features).astype(jnp.float32).T        # (in_features, B)
    if Bp != B:
        xT = jnp.pad(xT, ((0, 0), (0, Bp - B)))

    # ---- Fold LinReLU bias subtraction into post-matmul bias (column vectors):
    #      (x - b) @ W == x @ W - b @ W   ==>   W^T x^T + (-(W^T b))
    first_broadcast = (in_features == 1)
    if first_broadcast:
        w0t = w0.reshape(num_units, 1) if w0.shape == (1, num_units) else w0.T
        w0t = w0t.reshape(num_units, 1)
        beta0t = -(b0.reshape(1, 1)[0, 0] * w0t)                 # (num_units, 1)
    else:
        w0t = w0.T                                               # (num_units, in_features)
        beta0t = -(w0.T @ b0.reshape(-1, 1))                     # (num_units, 1)
    w1t = w1.T                                                   # (64, num_units)
    beta1t = -(w1.T @ b1.reshape(-1, 1))                         # (64, 1)
    w2t = w2.T                                                   # (32, 64)
    beta2t = -(w2.T @ b2.reshape(-1, 1))                         # (32, 1)

    final_reduce = (out_features == 1)
    w3t = w3.reshape(hidden_last, 1) if final_reduce else w3.T   # (32,1) or (out, 32)

    # Replicated parameter blocks: full array, same (0, 0) block every grid step
    # -> DMA'd once, resident in VMEM for the whole grid.
    def rep(arr):
        return pl.BlockSpec(arr.shape, lambda i: (0, 0))

    grid = (Bp // tile_b,)
    kernel = _make_kernel(first_broadcast, final_reduce, matmul_dtype)

    out = pl.pallas_call(
        kernel,
        out_shape=jax.ShapeDtypeStruct((out_features, Bp), jnp.float32),
        grid_spec=pltpu.PrefetchScalarGridSpec(
            num_scalar_prefetch=0,
            grid=grid,
            in_specs=[
                pl.BlockSpec((in_features, tile_b), lambda i: (0, i)),  # x tile (lane-dense)
                rep(w0t), rep(beta0t),
                rep(w1t), rep(beta1t),
                rep(w2t), rep(beta2t),
                rep(w3t),
            ],
            out_specs=pl.BlockSpec((out_features, tile_b), lambda i: (0, i)),
        ),
        compiler_params=pltpu.CompilerParams(
            dimension_semantics=("parallel",)),
    )(xT, w0t, beta0t, w1t, beta1t, w2t, beta2t, w3t)

    # Back to the module's (B, output_shape) orientation. For out_features == 1 this
    # is a free, contiguous reshape; otherwise it is wrapper-side layout plumbing.
    if out_features == 1:
        return out.reshape(Bp, 1)[:B]
    return out[:, :B].T


def init_params(key, input_shape, num_units, hidden_sizes, output_shape):
    """Deterministic synthetic parameters matching the module's __init__ shapes."""
    all_hidden = [num_units] + list(hidden_sizes)
    dims = [input_shape] + all_hidden          # LinReLU layer dims
    keys = jax.random.split(key, 2 * len(dims))

    params = []
    k_idx = 0
    # LinReLU stack: weight (in, out), bias (in,)  -- op is (x - b) @ W
    for d_in, d_out in zip(dims[:-1], dims[1:]):
        w = jax.random.normal(keys[k_idx], (d_in, d_out), jnp.float32) * (1.0 / jnp.sqrt(d_in))
        k_idx += 1
        b = jax.random.normal(keys[k_idx], (d_in,), jnp.float32) * 0.1
        k_idx += 1
        params.append((w, b))
    # Final Linear(hidden_sizes[-1] -> output_shape, bias=False)
    w_last = jax.random.normal(keys[k_idx], (dims[-1], output_shape), jnp.float32) * (
        1.0 / jnp.sqrt(dims[-1]))
    params.append(w_last)
    return params


def reference_forward(x, params):
    """Pure-JAX reference of the same math (eval-mode dropout = identity)."""
    (w0, b0), (w1, b1), (w2, b2), w3 = params
    h = x.reshape(x.shape[0], -1)
    h = jnp.maximum((h - b0) @ w0, 0.0)
    h = jnp.maximum((h - b1) @ w1, 0.0)
    h = jnp.maximum((h - b2) @ w2, 0.0)
    return h @ w3


if __name__ == "__main__":
    # Small, module-consistent shapes: each FeatureNN handles one scalar feature.
    input_shape = 1
    output_shape = 1
    num_units = 32
    hidden_sizes = [64, 32]

    key = jax.random.PRNGKey(0)
    k_x, k_p = jax.random.split(key)
    params = init_params(k_p, input_shape, num_units, hidden_sizes, output_shape)

    # Case 1: tiny batch (tile adapts down to 128, single grid step).
    batch = 16
    x = jax.random.normal(k_x, (batch,), jnp.float32)
    y = jax.block_until_ready(feature_nn_forward(x, params))
    y_ref = reference_forward(x, params)
    assert y.shape == (batch, output_shape)
    assert jnp.allclose(y, y_ref, atol=1e-4, rtol=1e-4), "mismatch vs reference (B=16)"

    # Case 2: non-multiple batch to exercise the padding / tiling path.
    batch2 = 300
    x2 = jax.random.normal(jax.random.PRNGKey(1), (batch2,), jnp.float32)
    y2 = jax.block_until_ready(feature_nn_forward(x2, params, tile_b=1024))
    y2_ref = reference_forward(x2, params)
    assert y2.shape == (batch2, output_shape)
    assert jnp.allclose(y2, y2_ref, atol=1e-4, rtol=1e-4), "mismatch vs reference (B=300)"

    print("KERNEL_OK")
</pallas_src>

<mosaic_0001>
module attributes {stable_mosaic.version = 11 : i64} {
  func.func @kernel(%arg0: i32, %arg1: memref<1x128xf32, #tpu.memory_space<vmem>>, %arg2: memref<32x1xf32, #tpu.memory_space<vmem>>, %arg3: memref<32x1xf32, #tpu.memory_space<vmem>>, %arg4: memref<64x32xf32, #tpu.memory_space<vmem>>, %arg5: memref<64x1xf32, #tpu.memory_space<vmem>>, %arg6: memref<32x64xf32, #tpu.memory_space<vmem>>, %arg7: memref<32x1xf32, #tpu.memory_space<vmem>>, %arg8: memref<32x1xf32, #tpu.memory_space<vmem>>, %arg9: memref<1x128xf32, #tpu.memory_space<vmem>>) attributes {dimension_semantics = [#tpu.dimension_semantics<parallel>], iteration_bounds = array<i64: 1>, scalar_prefetch = 0 : i64, scratch_operands = 0 : i64, tpu.core_type = #tpu.core_type<tc>, window_params = [{transform_indices = @transform_0, window_bounds = array<i64: 1, 128>}, {pipeline_mode = #tpu.pipeline_mode<synchronous>, transform_indices = @transform_1, window_bounds = array<i64: 32, 1>}, {pipeline_mode = #tpu.pipeline_mode<synchronous>, transform_indices = @transform_2, window_bounds = array<i64: 32, 1>}, {pipeline_mode = #tpu.pipeline_mode<synchronous>, transform_indices = @transform_3, window_bounds = array<i64: 64, 32>}, {pipeline_mode = #tpu.pipeline_mode<synchronous>, transform_indices = @transform_4, window_bounds = array<i64: 64, 1>}, {pipeline_mode = #tpu.pipeline_mode<synchronous>, transform_indices = @transform_5, window_bounds = array<i64: 32, 64>}, {pipeline_mode = #tpu.pipeline_mode<synchronous>, transform_indices = @transform_6, window_bounds = array<i64: 32, 1>}, {pipeline_mode = #tpu.pipeline_mode<synchronous>, transform_indices = @transform_7, window_bounds = array<i64: 32, 1>}, {transform_indices = @transform_8, window_bounds = array<i64: 1, 128>}]} {
    %c0 = arith.constant 0 : index
    %c0_0 = arith.constant 0 : index
    %0 = vector.load %arg1[%c0, %c0_0] : memref<1x128xf32, #tpu.memory_space<vmem>>, vector<1x128xf32>
    %c0_1 = arith.constant 0 : index
    %c0_2 = arith.constant 0 : index
    %1 = vector.load %arg2[%c0_1, %c0_2] : memref<32x1xf32, #tpu.memory_space<vmem>>, vector<32x1xf32>
    %2 = vector.broadcast %1 : vector<32x1xf32> to vector<32x128xf32>
    %3 = vector.broadcast %0 : vector<1x128xf32> to vector<32x128xf32>
    %4 = arith.mulf %2, %3 : vector<32x128xf32>
    %c0_3 = arith.constant 0 : index
    %c0_4 = arith.constant 0 : index
    %5 = vector.load %arg3[%c0_3, %c0_4] : memref<32x1xf32, #tpu.memory_space<vmem>>, vector<32x1xf32>
    %6 = vector.broadcast %5 : vector<32x1xf32> to vector<32x128xf32>
    %7 = arith.addf %4, %6 : vector<32x128xf32>
    %cst = arith.constant 0.000000e+00 : f32
    %8 = vector.broadcast %cst : f32 to vector<32x128xf32>
    %9 = arith.maximumf %7, %8 : vector<32x128xf32>
    %c0_5 = arith.constant 0 : index
    %c0_6 = arith.constant 0 : index
    %10 = vector.load %arg4[%c0_5, %c0_6] : memref<64x32xf32, #tpu.memory_space<vmem>>, vector<64x32xf32>
    %cst_7 = arith.constant dense<0.000000e+00> : vector<64x128xf32>
    %11 = tpu.matmul %10, %9, %cst_7 {dimension_numbers = #tpu.dot_dimension_numbers<[1], [0], [0], [1], [0, 0, 1, 1], [], []>} : vector<64x32xf32>, vector<32x128xf32>, vector<64x128xf32> -> vector<64x128xf32>
    %c0_8 = arith.constant 0 : index
    %c0_9 = arith.constant 0 : index
    %12 = vector.load %arg5[%c0_8, %c0_9] : memref<64x1xf32, #tpu.memory_space<vmem>>, vector<64x1xf32>
    %13 = vector.broadcast %12 : vector<64x1xf32> to vector<64x128xf32>
    %14 = arith.addf %11, %13 : vector<64x128xf32>
    %cst_10 = arith.constant 0.000000e+00 : f32
    %15 = vector.broadcast %cst_10 : f32 to vector<64x128xf32>
    %16 = arith.maximumf %14, %15 : vector<64x128xf32>
    %c0_11 = arith.constant 0 : index
    %c0_12 = arith.constant 0 : index
    %17 = vector.load %arg6[%c0_11, %c0_12] : memref<32x64xf32, #tpu.memory_space<vmem>>, vector<32x64xf32>
    %cst_13 = arith.constant dense<0.000000e+00> : vector<32x128xf32>
    %18 = tpu.matmul %17, %16, %cst_13 {dimension_numbers = #tpu.dot_dimension_numbers<[1], [0], [0], [1], [0, 0, 1, 1], [], []>} : vector<32x64xf32>, vector<64x128xf32>, vector<32x128xf32> -> vector<32x128xf32>
    %c0_14 = arith.constant 0 : index
    %c0_15 = arith.constant 0 : index
    %19 = vector.load %arg7[%c0_14, %c0_15] : memref<32x1xf32, #tpu.memory_space<vmem>>, vector<32x1xf32>
    %20 = vector.broadcast %19 : vector<32x1xf32> to vector<32x128xf32>
    %21 = arith.addf %18, %20 : vector<32x128xf32>
    %cst_16 = arith.constant 0.000000e+00 : f32
    %22 = vector.broadcast %cst_16 : f32 to vector<32x128xf32>
    %23 = arith.maximumf %21, %22 : vector<32x128xf32>
    %c0_17 = arith.constant 0 : index
    %c0_18 = arith.constant 0 : index
    %24 = vector.load %arg8[%c0_17, %c0_18] : memref<32x1xf32, #tpu.memory_space<vmem>>, vector<32x1xf32>
    %25 = vector.broadcast %24 : vector<32x1xf32> to vector<32x128xf32>
    %26 = arith.mulf %25, %23 : vector<32x128xf32>
    %cst_19 = arith.constant dense<0.000000e+00> : vector<128xf32>
    %27 = vector.multi_reduction <add>, %26, %cst_19 [0] : vector<32x128xf32> to vector<128xf32>
    %28 = vector.shape_cast %27 : vector<128xf32> to vector<1x128xf32>
    %c0_20 = arith.constant 0 : index
    %c0_21 = arith.constant 0 : index
    %29 = vector.load %arg9[%c0_20, %c0_21] : memref<1x128xf32, #tpu.memory_space<vmem>>, vector<1x128xf32>
    tpu.vector_store %arg9[%c0_20, %c0_21], %28 {strides = array<i32>} : memref<1x128xf32, #tpu.memory_space<vmem>>, vector<1x128xf32>,
    return
  }
  func.func @transform_0(%arg0: i32) -> (i32, i32) {
    %c0_i32 = arith.constant 0 : i32
    %c0_i32_0 = arith.constant 0 : i32
    return %c0_i32, %arg0 : i32, i32
  }
  func.func @transform_1(%arg0: i32) -> (i32, i32) {
    %c0_i32 = arith.constant 0 : i32
    %c0_i32_0 = arith.constant 0 : i32
    %c0_i32_1 = arith.constant 0 : i32
    return %c0_i32, %c0_i32_0 : i32, i32
  }
  func.func @transform_2(%arg0: i32) -> (i32, i32) {
    %c0_i32 = arith.constant 0 : i32
    %c0_i32_0 = arith.constant 0 : i32
    %c0_i32_1 = arith.constant 0 : i32
    return %c0_i32, %c0_i32_0 : i32, i32
  }
  func.func @transform_3(%arg0: i32) -> (i32, i32) {
    %c0_i32 = arith.constant 0 : i32
    %c0_i32_0 = arith.constant 0 : i32
    %c0_i32_1 = arith.constant 0 : i32
    return %c0_i32, %c0_i32_0 : i32, i32
  }
  func.func @transform_4(%arg0: i32) -> (i32, i32) {
    %c0_i32 = arith.constant 0 : i32
    %c0_i32_0 = arith.constant 0 : i32
    %c0_i32_1 = arith.constant 0 : i32
    return %c0_i32, %c0_i32_0 : i32, i32
  }
  func.func @transform_5(%arg0: i32) -> (i32, i32) {
    %c0_i32 = arith.constant 0 : i32
    %c0_i32_0 = arith.constant 0 : i32
    %c0_i32_1 = arith.constant 0 : i32
    return %c0_i32, %c0_i32_0 : i32, i32
  }
  func.func @transform_6(%arg0: i32) -> (i32, i32) {
    %c0_i32 = arith.constant 0 : i32
    %c0_i32_0 = arith.constant 0 : i32
    %c0_i32_1 = arith.constant 0 : i32
    return %c0_i32, %c0_i32_0 : i32, i32
  }
  func.func @transform_7(%arg0: i32) -> (i32, i32) {
    %c0_i32 = arith.constant 0 : i32
    %c0_i32_0 = arith.constant 0 : i32
    %c0_i32_1 = arith.constant 0 : i32
    return %c0_i32, %c0_i32_0 : i32, i32
  }
  func.func @transform_8(%arg0: i32) -> (i32, i32) {
    %c0_i32 = arith.constant 0 : i32
    %c0_i32_0 = arith.constant 0 : i32
    return %c0_i32, %arg0 : i32, i32
  }
}

</mosaic_0001>

<llo_original>
// kernel: tpu_custom_call.1
$region0: #{tpu_custom_call.1}
  #allocation0 [shape = 'u32[]', space=smem, size = 0x4, offset = 0x4, fixed_abs, tag = 'smem constant byte address 0x4 - core index']
  #allocation1 [shape = 'u32[144,128]{1,0:T(1,128)}', space=vmem, size = 0x12000, scoped, tag = 'internal scratch']
  %s0 = inlined_call_operand.vmem [shape: f32[1,128], index: 0, kind: input, shape index: {}]
  %s1 = inlined_call_operand.vmem [shape: f32[32,1], index: 1, kind: input, shape index: {}]
  %s2 = inlined_call_operand.vmem [shape: f32[32,1], index: 2, kind: input, shape index: {}]
  %s3 = inlined_call_operand.vmem [shape: f32[64,32], index: 3, kind: input, shape index: {}]
  %s4 = inlined_call_operand.vmem [shape: f32[64,1], index: 4, kind: input, shape index: {}]
  %s5 = inlined_call_operand.vmem [shape: f32[32,64], index: 5, kind: input, shape index: {}]
  %s6 = inlined_call_operand.vmem [shape: f32[32,1], index: 6, kind: input, shape index: {}]
  %s7 = inlined_call_operand.vmem [shape: f32[32,1], index: 7, kind: input, shape index: {}]
  %s8 = inlined_call_operand.hbm [shape: f32[1,128], index: 8, kind: output, shape index: {}]
  %s9 = sld [smem:[#allocation0]]
  $region42: #{tpu_custom_call.1} parent=0
    _
  %s11 = ssub.s32 1, %s9
  %s12 = scalar_select 0, %s11, %s9
  $region1: #{tpu_custom_call.1} parent=0
    #allocation2 [shape = 'u8[512]{0}', space=vmem, size = 0x400, scoped, tag = 'output window, operand 0, single buffered']
    #allocation3 [shape = 's32[1]{0}', space=sflag, size = 0x4, scoped, tag = 'scoped memory for tpu_custom_call.1']
    %13 = vsyncpa [#allocation3], 0
    // Predicated region
    $region2: #{tpu_custom_call.1} parent=1 // pred_check
      _
    $region3: #{tpu_custom_call.1} parent=1 // pred_check_branch
      %15 = sbr.rel (0) target = $region5
    $region4: #{tpu_custom_call.1} parent=1 // pred_region
      _
    $region5: #{tpu_custom_call.1} parent=1 // pred_fallthru
      _
    // Predicated region
    $region6: #{tpu_custom_call.1} parent=1 // pred_check
      _
    $region7: #{tpu_custom_call.1} parent=1 // pred_check_branch
      %17 = sbr.rel (0) target = $region9
    $region8: #{tpu_custom_call.1} parent=1 // pred_region
      _
    $region9: #{tpu_custom_call.1} parent=1 // pred_fallthru
      _
    // Predicated region
    $region10: #{tpu_custom_call.1} parent=1 // pred_check
      _
    $region11: #{tpu_custom_call.1} parent=1 // pred_check_branch
      %19 = sbr.rel (0) target = $region13
    $region12: #{tpu_custom_call.1} parent=1 // pred_region
      _
    $region13: #{tpu_custom_call.1} parent=1 // pred_fallthru
      _
    // Predicated region
    $region14: #{tpu_custom_call.1} parent=1 // pred_check
      _
    $region15: #{tpu_custom_call.1} parent=1 // pred_check_branch
      %21 = sbr.rel (0) target = $region17
    $region16: #{tpu_custom_call.1} parent=1 // pred_region
      _
    $region17: #{tpu_custom_call.1} parent=1 // pred_fallthru
      _
    // Predicated region
    $region18: #{tpu_custom_call.1} parent=1 // pred_check
      _
    $region19: #{tpu_custom_call.1} parent=1 // pred_check_branch
      %23 = sbr.rel (0) target = $region21
    $region20: #{tpu_custom_call.1} parent=1 // pred_region
      _
    $region21: #{tpu_custom_call.1} parent=1 // pred_fallthru
      _
    // Predicated region
    $region22: #{tpu_custom_call.1} parent=1 // pred_check
      _
    $region23: #{tpu_custom_call.1} parent=1 // pred_check_branch
      %25 = sbr.rel (0) target = $region25
    $region24: #{tpu_custom_call.1} parent=1 // pred_region
      _
    $region25: #{tpu_custom_call.1} parent=1 // pred_fallthru
      _
    // Predicated region
    $region26: #{tpu_custom_call.1} parent=1 // pred_check
      _
    $region27: #{tpu_custom_call.1} parent=1 // pred_check_branch
      %27 = sbr.rel (0) target = $region29
    $region28: #{tpu_custom_call.1} parent=1 // pred_region
      _
    $region29: #{tpu_custom_call.1} parent=1 // pred_fallthru
      _
    // Predicated region
    $region30: #{tpu_custom_call.1} parent=1 // pred_check
      _
    $region31: #{tpu_custom_call.1} parent=1 // pred_check_branch
      %29 = sbr.rel (0) target = $region33
    $region32: #{tpu_custom_call.1} parent=1 // pred_region
      _
    $region33: #{tpu_custom_call.1} parent=1 // pred_fallthru
      _
    %v30 = vld [vmem:[%s0] sm:$0x1]
    %v31 = vld [vmem:[%s1] sm:$0xff]
    %v32 = vld [vmem:[%s1 + $0x8] sm:$0xff]
    %v33 = vld [vmem:[%s1 + $0x10] sm:$0xff]
    %v34 = vld [vmem:[%s1 + $0x18] sm:$0xff]
    %36 = vset.pattern.permute.xlu0 0
    %37 = vperm.xlu0 %36, %v31
    %v38 = vpop.permute.xlu0 %37
    %41 = vset.pattern.permute.xlu0 0
    %42 = vperm.xlu0 %41, %v32
    %v43 = vpop.permute.xlu0 %42
    %46 = vset.pattern.permute.xlu0 0
    %47 = vperm.xlu0 %46, %v33
    %v48 = vpop.permute.xlu0 %47
    %51 = vset.pattern.permute.xlu0 0
    %52 = vperm.xlu0 %51, %v34
    %v53 = vpop.permute.xlu0 %52
    %v56 = vlaneseq
    %v57 = vshrl.u32 %v56, 7
    %v58 = vsub.s32 0, %v57
    %v59 = vrot.slane %v30, %v58
    %v61 = vmul.f32 %v38, %v59
    %v62 = vmul.f32 %v43, %v59
    %v63 = vmul.f32 %v48, %v59
    %v64 = vmul.f32 %v53, %v59
    %v65 = vld [vmem:[%s2] sm:$0xff]
    %v66 = vld [vmem:[%s2 + $0x8] sm:$0xff]
    %v67 = vld [vmem:[%s2 + $0x10] sm:$0xff]
    %v68 = vld [vmem:[%s2 + $0x18] sm:$0xff]
    %70 = vset.pattern.permute.xlu0 0
    %71 = vperm.xlu0 %70, %v65
    %v72 = vpop.permute.xlu0 %71
    %75 = vset.pattern.permute.xlu0 0
    %76 = vperm.xlu0 %75, %v66
    %v77 = vpop.permute.xlu0 %76
    %80 = vset.pattern.permute.xlu0 0
    %81 = vperm.xlu0 %80, %v67
    %v82 = vpop.permute.xlu0 %81
    %85 = vset.pattern.permute.xlu0 0
    %86 = vperm.xlu0 %85, %v68
    %v87 = vpop.permute.xlu0 %86
    %v89 = vadd.f32 %v61, %v72
    %v90 = vadd.f32 %v62, %v77
    %v91 = vadd.f32 %v63, %v82
    %v92 = vadd.f32 %v64, %v87
    %v93 = vmax.f32 %v89, 0.0
    %v94 = vmax.f32 %v90, 0.0
    %v95 = vmax.f32 %v91, 0.0
    %v96 = vmax.f32 %v92, 0.0
    %v97 = vld [vmem:[%s3] sm:$0xff]
    %v98 = vld [vmem:[%s3 + $0x8] sm:$0xff]
    %v99 = vld [vmem:[%s3 + $0x10] sm:$0xff]
    %v100 = vld [vmem:[%s3 + $0x18] sm:$0xff]
    %v101 = vld [vmem:[%s3 + $0x20] sm:$0xff]
    %v102 = vld [vmem:[%s3 + $0x28] sm:$0xff]
    %v103 = vld [vmem:[%s3 + $0x30] sm:$0xff]
    %v104 = vld [vmem:[%s3 + $0x38] sm:$0xff]
    %v105 = vld [vmem:[%s4] sm:$0xff]
    %v106 = vld [vmem:[%s4 + $0x8] sm:$0xff]
    %v107 = vld [vmem:[%s4 + $0x10] sm:$0xff]
    %v108 = vld [vmem:[%s4 + $0x18] sm:$0xff]
    %v109 = vld [vmem:[%s4 + $0x20] sm:$0xff]
    %v110 = vld [vmem:[%s4 + $0x28] sm:$0xff]
    %v111 = vld [vmem:[%s4 + $0x30] sm:$0xff]
    %v112 = vld [vmem:[%s4 + $0x38] sm:$0xff]
    %114 = vset.pattern.permute.xlu0 0
    %115 = vperm.xlu0 %114, %v105
    %v116 = vpop.permute.xlu0 %115
    %119 = vset.pattern.permute.xlu0 0
    %120 = vperm.xlu0 %119, %v106
    %v121 = vpop.permute.xlu0 %120
    %124 = vset.pattern.permute.xlu0 0
    %125 = vperm.xlu0 %124, %v107
    %v126 = vpop.permute.xlu0 %125
    %129 = vset.pattern.permute.xlu0 0
    %130 = vperm.xlu0 %129, %v108
    %v131 = vpop.permute.xlu0 %130
    %134 = vset.pattern.permute.xlu0 0
    %135 = vperm.xlu0 %134, %v109
    %v136 = vpop.permute.xlu0 %135
    %139 = vset.pattern.permute.xlu0 0
    %140 = vperm.xlu0 %139, %v110
    %v141 = vpop.permute.xlu0 %140
    %144 = vset.pattern.permute.xlu0 0
    %145 = vperm.xlu0 %144, %v111
    %v146 = vpop.permute.xlu0 %145
    %149 = vset.pattern.permute.xlu0 0
    %150 = vperm.xlu0 %149, %v112
    %v151 = vpop.permute.xlu0 %150
    %vm153 = vcmask 261120
    %v155 = vsel %vm153, %v97, 0
    %v158 = vsel %vm153, %v98, 0
    %v161 = vsel %vm153, %v99, 0
    %v164 = vsel %vm153, %v100, 0
    %v167 = vsel %vm153, %v101, 0
    %v170 = vsel %vm153, %v102, 0
    %v173 = vsel %vm153, %v103, 0
    %v176 = vsel %vm153, %v104, 0
    %178 = vmatprep.subr.mxu0 0.0
    %179 = vmatpush1.msra.mxu0 %v93
    %180 = vmatprep.subr.mxu0 0.0
    %181 = vmatpush1.msra.mxu0 %v94
    %182 = vmatprep.subr.mxu0 0.0
    %183 = vmatpush1.msra.mxu0 %v95
    %184 = vmatprep.subr.mxu0 0.0
    %185 = vmatpush1.msra.mxu0 %v96
    %186 = vmatprep.subr.mxu0 0.0
    %187 = vmatpush1.msra.mxu0 0.0
    %188 = vmatprep.subr.mxu0 0.0
    %189 = vmatpush1.msra.mxu0 0.0
    %190 = vmatprep.subr.mxu0 0.0
    %191 = vmatpush1.msra.mxu0 0.0
    %192 = vmatprep.subr.mxu0 0.0
    %193 = vmatpush1.msra.mxu0 0.0
    %194 = vmatprep.subr.mxu0 0.0
    %195 = vmatpush1.msra.mxu0 0.0
    %196 = vmatprep.subr.mxu0 0.0
    %197 = vmatpush1.msra.mxu0 0.0
    %198 = vmatprep.subr.mxu0 0.0
    %199 = vmatpush1.msra.mxu0 0.0
    %200 = vmatprep.subr.mxu0 0.0
    %201 = vmatpush1.msra.mxu0 0.0
    %202 = vmatprep.subr.mxu0 0.0
    %203 = vmatpush1.msra.mxu0 0.0
    %204 = vmatprep.subr.mxu0 0.0
    %205 = vmatpush1.msra.mxu0 0.0
    %206 = vmatprep.subr.mxu0 0.0
    %207 = vmatpush1.msra.mxu0 0.0
    %208 = vmatprep.subr.mxu0 0.0
    %209 = vmatpush1.msra.mxu0 0.0
    %210 = vmatprep.subr.mxu0 0.0
    %211 = vmatpush1.msra.mxu0 0.0
    %212 = vmatprep.subr.mxu0 0.0
    %213 = vmatpush1.msra.mxu0 0.0
    %214 = vmatprep.subr.mxu0 0.0
    %215 = vmatpush1.msra.mxu0 0.0
    %216 = vmatprep.subr.mxu0 0.0
    %217 = vmatpush1.msra.mxu0 0.0
    %218 = vmatprep.subr.mxu0 0.0
    %219 = vmatpush1.msra.mxu0 0.0
    %220 = vmatprep.subr.mxu0 0.0
    %221 = vmatpush1.msra.mxu0 0.0
    %222 = vmatprep.subr.mxu0 0.0
    %223 = vmatpush1.msra.mxu0 0.0
    %224 = vmatprep.subr.mxu0 0.0
    %225 = vmatpush1.msra.mxu0 0.0
    %226 = vmatprep.subr.mxu0 0.0
    %227 = vmatpush1.msra.mxu0 0.0
    %228 = vmatprep.subr.mxu0 0.0
    %229 = vmatpush1.msra.mxu0 0.0
    %230 = vmatprep.subr.mxu0 0.0
    %231 = vmatpush1.msra.mxu0 0.0
    %232 = vmatprep.subr.mxu0 0.0
    %233 = vmatpush1.msra.mxu0 0.0
    %234 = vmatprep.subr.mxu0 0.0
    %235 = vmatpush1.msra.mxu0 0.0
    %236 = vmatprep.subr.mxu0 0.0
    %237 = vmatpush1.msra.mxu0 0.0
    %238 = vmatprep.subr.mxu0 0.0
    %239 = vmatpush1.msra.mxu0 0.0
    %240 = vmatprep.subr.mxu0 0.0
    %241 = vmatpush1.msra.mxu0 0.0
    %242 = vmatprep.mubr.f32.mxu0 0.0
    %243 = vmatmul.mubr.f32.gmra.mrb[0].mxu0 %v155
    %v244 = vpop.f32.mrb[0].mxu0
    %v245 = vadd.f32 %v116, %v244
    %v246 = vpop.f32.mrb[0].mxu0
    %247 = vmatprep.mubr.f32.mxu0 0.0
    %248 = vmatmul.mubr.f32.gmra.mrb[0].mxu0 %v158
    %v249 = vpop.f32.mrb[0].mxu0
    %v250 = vadd.f32 %v121, %v249
    %v251 = vpop.f32.mrb[0].mxu0
    %252 = vmatprep.mubr.f32.mxu0 0.0
    %253 = vmatmul.mubr.f32.gmra.mrb[0].mxu0 %v161
    %v254 = vpop.f32.mrb[0].mxu0
    %v255 = vadd.f32 %v126, %v254
    %v256 = vpop.f32.mrb[0].mxu0
    %257 = vmatprep.mubr.f32.mxu0 0.0
    %258 = vmatmul.mubr.f32.gmra.mrb[0].mxu0 %v164
    %v259 = vpop.f32.mrb[0].mxu0
    %v260 = vadd.f32 %v131, %v259
    %v261 = vpop.f32.mrb[0].mxu0
    %262 = vmatprep.mubr.f32.mxu0 0.0
    %263 = vmatmul.mubr.f32.gmra.mrb[0].mxu0 %v167
    %v264 = vpop.f32.mrb[0].mxu0
    %v265 = vadd.f32 %v136, %v264
    %v266 = vpop.f32.mrb[0].mxu0
    %267 = vmatprep.mubr.f32.mxu0 0.0
    %268 = vmatmul.mubr.f32.gmra.mrb[0].mxu0 %v170
    %v269 = vpop.f32.mrb[0].mxu0
    %v270 = vadd.f32 %v141, %v269
    %v271 = vpop.f32.mrb[0].mxu0
    %272 = vmatprep.mubr.f32.mxu0 0.0
    %273 = vmatmul.mubr.f32.gmra.mrb[0].mxu0 %v173
    %v274 = vpop.f32.mrb[0].mxu0
    %v275 = vadd.f32 %v146, %v274
    %v276 = vpop.f32.mrb[0].mxu0
    %277 = vmatprep.mubr.f32.mxu0 0.0
    %278 = vmatmul.mubr.f32.gmra.mrb[0].mxu0 %v176
    %v279 = vpop.f32.mrb[0].mxu0
    %v280 = vadd.f32 %v151, %v279
    %v281 = vpop.f32.mrb[0].mxu0
    %282 = vdwg.mxu0
    %v283 = vmax.f32 %v245, 0.0
    %v284 = vmax.f32 %v250, 0.0
    %v285 = vmax.f32 %v255, 0.0
    %v286 = vmax.f32 %v260, 0.0
    %v287 = vmax.f32 %v265, 0.0
    %v288 = vmax.f32 %v270, 0.0
    %v289 = vmax.f32 %v275, 0.0
    %v290 = vmax.f32 %v280, 0.0
    %v291 = vld [vmem:[%s5] sm:$0xff]
    %v292 = vld [vmem:[%s5 + $0x8] sm:$0xff]
    %v293 = vld [vmem:[%s5 + $0x10] sm:$0xff]
    %v294 = vld [vmem:[%s5 + $0x18] sm:$0xff]
    %v295 = vld [vmem:[%s6] sm:$0xff]
    %v296 = vld [vmem:[%s6 + $0x8] sm:$0xff]
    %v297 = vld [vmem:[%s6 + $0x10] sm:$0xff]
    %v298 = vld [vmem:[%s6 + $0x18] sm:$0xff]
    %300 = vset.pattern.permute.xlu0 0
    %301 = vperm.xlu0 %300, %v295
    %v302 = vpop.permute.xlu0 %301
    %305 = vset.pattern.permute.xlu0 0
    %306 = vperm.xlu0 %305, %v296
    %v307 = vpop.permute.xlu0 %306
    %310 = vset.pattern.permute.xlu0 0
    %311 = vperm.xlu0 %310, %v297
    %v312 = vpop.permute.xlu0 %311
    %315 = vset.pattern.permute.xlu0 0
    %316 = vperm.xlu0 %315, %v298
    %v317 = vpop.permute.xlu0 %316
    %vm319 = vcmask 523264
    %v321 = vsel %vm319, %v291, 0
    %v324 = vsel %vm319, %v292, 0
    %v327 = vsel %vm319, %v293, 0
    %v330 = vsel %vm319, %v294, 0
    %332 = vmatprep.subr.mxu0 0.0
    %333 = vmatpush1.msra.mxu0 %v283
    %334 = vmatprep.subr.mxu0 0.0
    %335 = vmatpush1.msra.mxu0 %v284
    %336 = vmatprep.subr.mxu0 0.0
    %337 = vmatpush1.msra.mxu0 %v285
    %338 = vmatprep.subr.mxu0 0.0
    %339 = vmatpush1.msra.mxu0 %v286
    %340 = vmatprep.subr.mxu0 0.0
    %341 = vmatpush1.msra.mxu0 %v287
    %342 = vmatprep.subr.mxu0 0.0
    %343 = vmatpush1.msra.mxu0 %v288
    %344 = vmatprep.subr.mxu0 0.0
    %345 = vmatpush1.msra.mxu0 %v289
    %346 = vmatprep.subr.mxu0 0.0
    %347 = vmatpush1.msra.mxu0 %v290
    %348 = vmatprep.subr.mxu0 0.0
    %349 = vmatpush1.msra.mxu0 0.0
    %350 = vmatprep.subr.mxu0 0.0
    %351 = vmatpush1.msra.mxu0 0.0
    %352 = vmatprep.subr.mxu0 0.0
    %353 = vmatpush1.msra.mxu0 0.0
    %354 = vmatprep.subr.mxu0 0.0
    %355 = vmatpush1.msra.mxu0 0.0
    %356 = vmatprep.subr.mxu0 0.0
    %357 = vmatpush1.msra.mxu0 0.0
    %358 = vmatprep.subr.mxu0 0.0
    %359 = vmatpush1.msra.mxu0 0.0
    %360 = vmatprep.subr.mxu0 0.0
    %361 = vmatpush1.msra.mxu0 0.0
    %362 = vmatprep.subr.mxu0 0.0
    %363 = vmatpush1.msra.mxu0 0.0
    %364 = vmatprep.subr.mxu0 0.0
    %365 = vmatpush1.msra.mxu0 0.0
    %366 = vmatprep.subr.mxu0 0.0
    %367 = vmatpush1.msra.mxu0 0.0
    %368 = vmatprep.subr.mxu0 0.0
    %369 = vmatpush1.msra.mxu0 0.0
    %370 = vmatprep.subr.mxu0 0.0
    %371 = vmatpush1.msra.mxu0 0.0
    %372 = vmatprep.subr.mxu0 0.0
    %373 = vmatpush1.msra.mxu0 0.0
    %374 = vmatprep.subr.mxu0 0.0
    %375 = vmatpush1.msra.mxu0 0.0
    %376 = vmatprep.subr.mxu0 0.0
    %377 = vmatpush1.msra.mxu0 0.0
    %378 = vmatprep.subr.mxu0 0.0
    %379 = vmatpush1.msra.mxu0 0.0
    %380 = vmatprep.subr.mxu0 0.0
    %381 = vmatpush1.msra.mxu0 0.0
    %382 = vmatprep.subr.mxu0 0.0
    %383 = vmatpush1.msra.mxu0 0.0
    %384 = vmatprep.subr.mxu0 0.0
    %385 = vmatpush1.msra.mxu0 0.0
    %386 = vmatprep.subr.mxu0 0.0
    %387 = vmatpush1.msra.mxu0 0.0
    %388 = vmatprep.subr.mxu0 0.0
    %389 = vmatpush1.msra.mxu0 0.0
    %390 = vmatprep.subr.mxu0 0.0
    %391 = vmatpush1.msra.mxu0 0.0
    %392 = vmatprep.subr.mxu0 0.0
    %393 = vmatpush1.msra.mxu0 0.0
    %394 = vmatprep.subr.mxu0 0.0
    %395 = vmatpush1.msra.mxu0 0.0
    %396 = vmatprep.mubr.f32.mxu0 0.0
    %397 = vmatmul.mubr.f32.gmra.mrb[0].mxu0 %v321
    %v398 = vpop.f32.mrb[0].mxu0
    %v399 = vadd.f32 %v302, %v398
    %v400 = vpop.f32.mrb[0].mxu0
    %401 = vmatprep.mubr.f32.mxu0 0.0
    %402 = vmatmul.mubr.f32.gmra.mrb[0].mxu0 %v324
    %v403 = vpop.f32.mrb[0].mxu0
    %v404 = vadd.f32 %v307, %v403
    %v405 = vpop.f32.mrb[0].mxu0
    %406 = vmatprep.mubr.f32.mxu0 0.0
    %407 = vmatmul.mubr.f32.gmra.mrb[0].mxu0 %v327
    %v408 = vpop.f32.mrb[0].mxu0
    %v409 = vadd.f32 %v312, %v408
    %v410 = vpop.f32.mrb[0].mxu0
    %411 = vmatprep.mubr.f32.mxu0 0.0
    %412 = vmatmul.mubr.f32.gmra.mrb[0].mxu0 %v330
    %v413 = vpop.f32.mrb[0].mxu0
    %v414 = vadd.f32 %v317, %v413
    %v415 = vpop.f32.mrb[0].mxu0
    %416 = vdwg.mxu0
    %v417 = vmax.f32 %v399, 0.0
    %v418 = vmax.f32 %v404, 0.0
    %v419 = vmax.f32 %v409, 0.0
    %v420 = vmax.f32 %v414, 0.0
    %v421 = vld [vmem:[%s7] sm:$0xff]
    %v422 = vld [vmem:[%s7 + $0x8] sm:$0xff]
    %v423 = vld [vmem:[%s7 + $0x10] sm:$0xff]
    %v424 = vld [vmem:[%s7 + $0x18] sm:$0xff]
    %426 = vset.pattern.permute.xlu0 0
    %427 = vperm.xlu0 %426, %v421
    %v428 = vpop.permute.xlu0 %427
    %431 = vset.pattern.permute.xlu0 0
    %432 = vperm.xlu0 %431, %v422
    %v433 = vpop.permute.xlu0 %432
    %436 = vset.pattern.permute.xlu0 0
    %437 = vperm.xlu0 %436, %v423
    %v438 = vpop.permute.xlu0 %437
    %441 = vset.pattern.permute.xlu0 0
    %442 = vperm.xlu0 %441, %v424
    %v443 = vpop.permute.xlu0 %442
    %v445 = vmul.f32 %v428, %v417
    %v446 = vmul.f32 %v433, %v418
    %v447 = vmul.f32 %v438, %v419
    %v448 = vmul.f32 %v443, %v420
    %v449 = vadd.f32 %v445, %v446
    %v450 = vadd.f32 %v449, %v447
    %v451 = vadd.f32 %v450, %v448
    %v452 = vrot.slane %v451, 4
    %v453 = vadd.f32 %v451, %v452
    %v454 = vrot.slane %v453, 2
    %v455 = vadd.f32 %v453, %v454
    %v456 = vrot.slane %v455, 1
    %v457 = vadd.f32 %v455, %v456
    %458 = vst [vmem:[#allocation2] sm:$0x1] %v457
    // Predicated region
    $region34: #{tpu_custom_call.1} parent=1 // pred_check
      _
    $region35: #{tpu_custom_call.1} parent=1 // pred_check_branch
      %460 = sbr.rel (0) target = $region37
    $region36: #{tpu_custom_call.1} parent=1 // pred_region
      %s462 = ssub.s32 16, 16
      %463 = vsyncadd [#allocation3], %s462
      %s465 = sshll.u32 [#allocation2], 4
      %s466 = int_to_ptr.vmem [resolvable:$true] %s465
      %468 = dma.vmem_to_hbm [thread:$0]  %s466, 16, %s8, [#allocation3]
    $region37: #{tpu_custom_call.1} parent=1 // pred_fallthru
      _
    // Predicated region
    $region38: #{tpu_custom_call.1} parent=1 // pred_check
      _
    $region39: #{tpu_custom_call.1} parent=1 // pred_check_branch
      %470 = sbr.rel (0) target = $region41
    $region40: #{tpu_custom_call.1} parent=1 // pred_region
      %471 = dma.done [#allocation3], 16
    $region41: #{tpu_custom_call.1} parent=1 // pred_fallthru
      _
    %472 = vsyncpa [#allocation3], 1

</llo_original>
